<compile_context>
chip_gen: v7x
topology: tpu7x:2x2x1
jax: 0.10.0
libtpu: 0.0.40
codegen_flags: <defaults>
</compile_context>

<pallas_src>
import functools

import jax
import jax.numpy as jnp
from jax.experimental import pallas as pl
from jax.experimental.pallas import tpu as pltpu


def _round_up(a, m):
    return ((a + m - 1) // m) * m


def _pick_tile_b(B, F, vmem_budget_bytes=8 * 1024 * 1024):
    """Pick a batch tile (multiple of 128) that keeps the double-buffered
    x/decoded/loss tiles comfortably inside scoped VMEM."""
    per_col_bytes = 4 * (2 * F + 1) * 2          # (x + dec + loss) * double buffer
    cap = max(128, (vmem_budget_bytes // per_col_bytes) // 128 * 128)
    cap = min(cap, 2048)                          # diminishing returns past this
    return min(cap, _round_up(B, 128))


def ae_kernel(xT_ref,
              w1t_ref, b1_ref,
              w23t_ref, b23_ref,
              w4t_ref, b4_ref,
              decT_ref, lossT_ref):
    # Transposed layout: batch on the 128-lane axis.
    xT = xT_ref[...].astype(jnp.float32)                                # [F, TB]

    # encoder first layer: relu(W1^T @ x^T + b1)
    h1 = jnp.dot(w1t_ref[...], xT,
                 preferred_element_type=jnp.float32) + b1_ref[...]       # [8, TB]
    h1 = jnp.maximum(h1, 0.0)

    # folded bottleneck (Linear(8,2) -> Linear(2,8)) + decoder ReLU
    h2 = jnp.dot(w23t_ref[...], h1,
                 preferred_element_type=jnp.float32) + b23_ref[...]      # [8, TB]
    h2 = jnp.maximum(h2, 0.0)

    # decoder output layer
    dec = jnp.dot(w4t_ref[...], h2,
                  preferred_element_type=jnp.float32) + b4_ref[...]      # [F, TB]

    decT_ref[...] = dec.astype(decT_ref.dtype)

    # MSELoss(reduction='none')(X, decoded).mean(dim=1) -> per-sample scalar
    err = xT - dec
    lossT_ref[...] = jnp.mean(err * err, axis=0, keepdims=True)          # [1, TB]


def _ae_forward_impl(x, params, tile_b=None):
    """x: [B, F] float32; params: dict (w/b in PyTorch-style [in,out]/[1,out]).

    Returns (decoded [B, F], loss [B]) matching the PyTorch forward.
    """
    B, F = x.shape

    # --- trace-time parameter folding / layout (tiny, fused by XLA) --------
    w23 = params["w2"] @ params["w3"]                       # [8, 8]
    b23 = params["b2"] @ params["w3"] + params["b3"]        # [1, 8]

    w1t = params["w1"].T                                    # [8, F]
    w23t = w23.T                                            # [8, 8]
    w4t = params["w4"].T                                    # [F, 8]
    b1c = params["b1"].T                                    # [8, 1]
    b23c = b23.T                                            # [8, 1]
    b4c = params["b4"].T                                    # [F, 1]

    # --- batch tiling (batch on the lane axis -> multiples of 128) ---------
    TB = tile_b if tile_b is not None else _pick_tile_b(B, F)
    TB = max(128, _round_up(TB, 128))
    Bp = _round_up(B, TB)
    xT = jnp.pad(x.T, ((0, 0), (0, Bp - B)))                # [F, Bp]

    grid = (Bp // TB,)

    batch_spec = lambda shape: pl.BlockSpec(shape, lambda i: (0, i))
    const_spec = lambda shape: pl.BlockSpec(shape, lambda i: (0, 0))

    flops = 2 * Bp * (F * 8 + 8 * 8 + 8 * F) + 6 * Bp * F
    bytes_accessed = 4 * (2 * Bp * F + Bp + 2 * F * 8 + 8 * 8 + 8 + 8 + F)

    decT, lossT = pl.pallas_call(
        ae_kernel,
        out_shape=(
            jax.ShapeDtypeStruct((F, Bp), x.dtype),
            jax.ShapeDtypeStruct((1, Bp), jnp.float32),
        ),
        grid=grid,
        in_specs=[
            batch_spec((F, TB)),        # x^T tile
            const_spec((8, F)),         # W1^T   (VMEM-resident across steps)
            const_spec((8, 1)),         # b1
            const_spec((8, 8)),         # W23^T
            const_spec((8, 1)),         # b23
            const_spec((F, 8)),         # W4^T
            const_spec((F, 1)),         # b4
        ],
        out_specs=(
            batch_spec((F, TB)),        # decoded^T tile (lane-dense store)
            batch_spec((1, TB)),        # loss tile (lane-dense store)
        ),
        compiler_params=pltpu.CompilerParams(
            dimension_semantics=("parallel",)),
        cost_estimate=pl.CostEstimate(
            flops=flops, transcendentals=0, bytes_accessed=bytes_accessed),
    )(xT, w1t, b1c, w23t, b23c, w4t, b4c)

    decoded = decT[:, :B].T                                 # [B, F]
    loss = lossT[0, :B]                                     # [B]
    return decoded, loss


# jit the whole forward so the pad / transpose / slice layout ops fuse with
# the pallas_call instead of running as standalone XLA programs.
ae_forward = jax.jit(_ae_forward_impl, static_argnames=("tile_b",))


def init_params(key, n_features):
    """Deterministic init mimicking torch.nn.Linear default (uniform +/- 1/sqrt(fan_in))."""
    dims = [(n_features, 8), (8, 2), (2, 8), (8, n_features)]
    params = {}
    keys = jax.random.split(key, 2 * len(dims))
    for i, (fan_in, fan_out) in enumerate(dims):
        bound = 1.0 / jnp.sqrt(fan_in)
        params[f"w{i+1}"] = jax.random.uniform(
            keys[2 * i], (fan_in, fan_out), jnp.float32, -bound, bound)
        params[f"b{i+1}"] = jax.random.uniform(
            keys[2 * i + 1], (1, fan_out), jnp.float32, -bound, bound)
    return params


def reference_forward(x, params):
    h1 = jnp.maximum(x @ params["w1"] + params["b1"], 0.0)
    z = h1 @ params["w2"] + params["b2"]
    h2 = jnp.maximum(z @ params["w3"] + params["b3"], 0.0)
    dec = h2 @ params["w4"] + params["b4"]
    loss = jnp.mean((x - dec) ** 2, axis=1)
    return dec, loss


if __name__ == "__main__":
    key = jax.random.PRNGKey(0)
    k_x1, k_x2, k_p = jax.random.split(key, 3)

    F = 16  # context['output_features']
    params = init_params(k_p, F)

    # Case 1: small batch (single grid step, padded to 128 lanes).
    x_small = jax.random.normal(k_x1, (8, F), dtype=jnp.float32)
    dec_s, loss_s = ae_forward(x_small, params)
    dec_s = jax.block_until_ready(dec_s)
    loss_s = jax.block_until_ready(loss_s)
    ref_dec_s, ref_loss_s = reference_forward(x_small, params)
    assert dec_s.shape == (8, F) and loss_s.shape == (8,)
    assert jnp.allclose(dec_s, ref_dec_s, atol=1e-5, rtol=1e-5)
    assert jnp.allclose(loss_s, ref_loss_s, atol=1e-5, rtol=1e-5)

    # Case 2: non-multiple batch exercising the batch grid + padding path.
    B = 300
    x = jax.random.normal(k_x2, (B, F), dtype=jnp.float32)
    decoded, loss = ae_forward(x, params, tile_b=128)
    decoded = jax.block_until_ready(decoded)
    loss = jax.block_until_ready(loss)
    ref_dec, ref_loss = reference_forward(x, params)
    assert decoded.shape == (B, F) and loss.shape == (B,)
    assert jnp.allclose(decoded, ref_dec, atol=1e-5, rtol=1e-5)
    assert jnp.allclose(loss, ref_loss, atol=1e-5, rtol=1e-5)

    print("KERNEL_OK")
</pallas_src>

<mosaic_0001>
module attributes {stable_mosaic.version = 11 : i64} {
  func.func @ae_kernel(%arg0: i32, %arg1: memref<16x128xf32, #tpu.memory_space<vmem>>, %arg2: memref<8x16xf32, #tpu.memory_space<vmem>>, %arg3: memref<8x1xf32, #tpu.memory_space<vmem>>, %arg4: memref<8x8xf32, #tpu.memory_space<vmem>>, %arg5: memref<8x1xf32, #tpu.memory_space<vmem>>, %arg6: memref<16x8xf32, #tpu.memory_space<vmem>>, %arg7: memref<16x1xf32, #tpu.memory_space<vmem>>, %arg8: memref<16x128xf32, #tpu.memory_space<vmem>>, %arg9: memref<1x128xf32, #tpu.memory_space<vmem>>) attributes {dimension_semantics = [#tpu.dimension_semantics<parallel>], iteration_bounds = array<i64: 1>, scalar_prefetch = 0 : i64, scratch_operands = 0 : i64, tpu.core_type = #tpu.core_type<tc>, window_params = [{transform_indices = @transform_0, window_bounds = array<i64: 16, 128>}, {pipeline_mode = #tpu.pipeline_mode<synchronous>, transform_indices = @transform_1, window_bounds = array<i64: 8, 16>}, {pipeline_mode = #tpu.pipeline_mode<synchronous>, transform_indices = @transform_2, window_bounds = array<i64: 8, 1>}, {pipeline_mode = #tpu.pipeline_mode<synchronous>, transform_indices = @transform_3, window_bounds = array<i64: 8, 8>}, {pipeline_mode = #tpu.pipeline_mode<synchronous>, transform_indices = @transform_4, window_bounds = array<i64: 8, 1>}, {pipeline_mode = #tpu.pipeline_mode<synchronous>, transform_indices = @transform_5, window_bounds = array<i64: 16, 8>}, {pipeline_mode = #tpu.pipeline_mode<synchronous>, transform_indices = @transform_6, window_bounds = array<i64: 16, 1>}, {transform_indices = @transform_7, window_bounds = array<i64: 16, 128>}, {transform_indices = @transform_8, window_bounds = array<i64: 1, 128>}]} {
    %c0 = arith.constant 0 : index
    %c0_0 = arith.constant 0 : index
    %0 = vector.load %arg1[%c0, %c0_0] : memref<16x128xf32, #tpu.memory_space<vmem>>, vector<16x128xf32>
    %c0_1 = arith.constant 0 : index
    %c0_2 = arith.constant 0 : index
    %1 = vector.load %arg2[%c0_1, %c0_2] : memref<8x16xf32, #tpu.memory_space<vmem>>, vector<8x16xf32>
    %cst = arith.constant dense<0.000000e+00> : vector<8x128xf32>
    %2 = tpu.matmul %1, %0, %cst {dimension_numbers = #tpu.dot_dimension_numbers<[1], [0], [0], [1], [0, 0, 1, 1], [], []>} : vector<8x16xf32>, vector<16x128xf32>, vector<8x128xf32> -> vector<8x128xf32>
    %c0_3 = arith.constant 0 : index
    %c0_4 = arith.constant 0 : index
    %3 = vector.load %arg3[%c0_3, %c0_4] : memref<8x1xf32, #tpu.memory_space<vmem>>, vector<8x1xf32>
    %4 = vector.broadcast %3 : vector<8x1xf32> to vector<8x128xf32>
    %5 = arith.addf %2, %4 : vector<8x128xf32>
    %cst_5 = arith.constant 0.000000e+00 : f32
    %6 = vector.broadcast %cst_5 : f32 to vector<8x128xf32>
    %7 = arith.maximumf %5, %6 : vector<8x128xf32>
    %c0_6 = arith.constant 0 : index
    %c0_7 = arith.constant 0 : index
    %8 = vector.load %arg4[%c0_6, %c0_7] : memref<8x8xf32, #tpu.memory_space<vmem>>, vector<8x8xf32>
    %cst_8 = arith.constant dense<0.000000e+00> : vector<8x128xf32>
    %9 = tpu.matmul %8, %7, %cst_8 {dimension_numbers = #tpu.dot_dimension_numbers<[1], [0], [0], [1], [0, 0, 1, 1], [], []>} : vector<8x8xf32>, vector<8x128xf32>, vector<8x128xf32> -> vector<8x128xf32>
    %c0_9 = arith.constant 0 : index
    %c0_10 = arith.constant 0 : index
    %10 = vector.load %arg5[%c0_9, %c0_10] : memref<8x1xf32, #tpu.memory_space<vmem>>, vector<8x1xf32>
    %11 = vector.broadcast %10 : vector<8x1xf32> to vector<8x128xf32>
    %12 = arith.addf %9, %11 : vector<8x128xf32>
    %cst_11 = arith.constant 0.000000e+00 : f32
    %13 = vector.broadcast %cst_11 : f32 to vector<8x128xf32>
    %14 = arith.maximumf %12, %13 : vector<8x128xf32>
    %c0_12 = arith.constant 0 : index
    %c0_13 = arith.constant 0 : index
    %15 = vector.load %arg6[%c0_12, %c0_13] : memref<16x8xf32, #tpu.memory_space<vmem>>, vector<16x8xf32>
    %cst_14 = arith.constant dense<0.000000e+00> : vector<16x128xf32>
    %16 = tpu.matmul %15, %14, %cst_14 {dimension_numbers = #tpu.dot_dimension_numbers<[1], [0], [0], [1], [0, 0, 1, 1], [], []>} : vector<16x8xf32>, vector<8x128xf32>, vector<16x128xf32> -> vector<16x128xf32>
    %c0_15 = arith.constant 0 : index
    %c0_16 = arith.constant 0 : index
    %17 = vector.load %arg7[%c0_15, %c0_16] : memref<16x1xf32, #tpu.memory_space<vmem>>, vector<16x1xf32>
    %18 = vector.broadcast %17 : vector<16x1xf32> to vector<16x128xf32>
    %19 = arith.addf %16, %18 : vector<16x128xf32>
    %c0_17 = arith.constant 0 : index
    %c0_18 = arith.constant 0 : index
    %20 = vector.load %arg8[%c0_17, %c0_18] : memref<16x128xf32, #tpu.memory_space<vmem>>, vector<16x128xf32>
    tpu.vector_store %arg8[%c0_17, %c0_18], %19 {strides = array<i32>} : memref<16x128xf32, #tpu.memory_space<vmem>>, vector<16x128xf32>,
    %21 = arith.subf %0, %19 : vector<16x128xf32>
    %22 = arith.mulf %21, %21 : vector<16x128xf32>
    %cst_19 = arith.constant dense<0.000000e+00> : vector<128xf32>
    %23 = vector.multi_reduction <add>, %22, %cst_19 [0] : vector<16x128xf32> to vector<128xf32>
    %24 = vector.shape_cast %23 : vector<128xf32> to vector<1x128xf32>
    %cst_20 = arith.constant 1.600000e+01 : f32
    %25 = vector.broadcast %cst_20 : f32 to vector<1x128xf32>
    %26 = arith.divf %24, %25 : vector<1x128xf32>
    %c0_21 = arith.constant 0 : index
    %c0_22 = arith.constant 0 : index
    %27 = vector.load %arg9[%c0_21, %c0_22] : memref<1x128xf32, #tpu.memory_space<vmem>>, vector<1x128xf32>
    tpu.vector_store %arg9[%c0_21, %c0_22], %26 {strides = array<i32>} : memref<1x128xf32, #tpu.memory_space<vmem>>, vector<1x128xf32>,
    return
  }
  func.func @transform_0(%arg0: i32) -> (i32, i32) {
    %c0_i32 = arith.constant 0 : i32
    %c0_i32_0 = arith.constant 0 : i32
    return %c0_i32, %arg0 : i32, i32
  }
  func.func @transform_1(%arg0: i32) -> (i32, i32) {
    %c0_i32 = arith.constant 0 : i32
    %c0_i32_0 = arith.constant 0 : i32
    %c0_i32_1 = arith.constant 0 : i32
    return %c0_i32, %c0_i32_0 : i32, i32
  }
  func.func @transform_2(%arg0: i32) -> (i32, i32) {
    %c0_i32 = arith.constant 0 : i32
    %c0_i32_0 = arith.constant 0 : i32
    %c0_i32_1 = arith.constant 0 : i32
    return %c0_i32, %c0_i32_0 : i32, i32
  }
  func.func @transform_3(%arg0: i32) -> (i32, i32) {
    %c0_i32 = arith.constant 0 : i32
    %c0_i32_0 = arith.constant 0 : i32
    %c0_i32_1 = arith.constant 0 : i32
    return %c0_i32, %c0_i32_0 : i32, i32
  }
  func.func @transform_4(%arg0: i32) -> (i32, i32) {
    %c0_i32 = arith.constant 0 : i32
    %c0_i32_0 = arith.constant 0 : i32
    %c0_i32_1 = arith.constant 0 : i32
    return %c0_i32, %c0_i32_0 : i32, i32
  }
  func.func @transform_5(%arg0: i32) -> (i32, i32) {
    %c0_i32 = arith.constant 0 : i32
    %c0_i32_0 = arith.constant 0 : i32
    %c0_i32_1 = arith.constant 0 : i32
    return %c0_i32, %c0_i32_0 : i32, i32
  }
  func.func @transform_6(%arg0: i32) -> (i32, i32) {
    %c0_i32 = arith.constant 0 : i32
    %c0_i32_0 = arith.constant 0 : i32
    %c0_i32_1 = arith.constant 0 : i32
    return %c0_i32, %c0_i32_0 : i32, i32
  }
  func.func @transform_7(%arg0: i32) -> (i32, i32) {
    %c0_i32 = arith.constant 0 : i32
    %c0_i32_0 = arith.constant 0 : i32
    return %c0_i32, %arg0 : i32, i32
  }
  func.func @transform_8(%arg0: i32) -> (i32, i32) {
    %c0_i32 = arith.constant 0 : i32
    %c0_i32_0 = arith.constant 0 : i32
    return %c0_i32, %arg0 : i32, i32
  }
}

</mosaic_0001>

<llo_original>
// kernel: _ae_forward_impl.1
$region0: #{_ae_forward_impl.1}
  #allocation0 [shape = 'u32[]', space=smem, size = 0x4, offset = 0x4, fixed_abs, tag = 'smem constant byte address 0x4 - core index']
  #allocation1 [shape = 'u32[144,128]{1,0:T(1,128)}', space=vmem, size = 0x12000, scoped, tag = 'internal scratch']
  %s0 = inlined_call_operand.vmem [shape: f32[16,128], index: 0, kind: input, shape index: {}]
  %s1 = inlined_call_operand.vmem [shape: f32[8,16], index: 1, kind: input, shape index: {}]
  %s2 = inlined_call_operand.vmem [shape: f32[8,1], index: 2, kind: input, shape index: {}]
  %s3 = inlined_call_operand.vmem [shape: f32[8,8], index: 3, kind: input, shape index: {}]
  %s4 = inlined_call_operand.vmem [shape: f32[8,1], index: 4, kind: input, shape index: {}]
  %s5 = inlined_call_operand.vmem [shape: f32[16,8], index: 5, kind: input, shape index: {}]
  %s6 = inlined_call_operand.vmem [shape: f32[16,1], index: 6, kind: input, shape index: {}]
  %s7 = inlined_call_operand.vmem [shape: f32[16,128], index: 7, kind: output, shape index: {0}]
  %s8 = inlined_call_operand.vmem [shape: f32[1,128], index: 8, kind: output, shape index: {1}]
  %9 = xla_tuple %s7, %s8
  %s10 = sld [smem:[#allocation0]]
  $region46: #{_ae_forward_impl.1} parent=0
    _
  %s12 = ssub.s32 1, %s10
  %s13 = scalar_select 0, %s12, %s10
  // Predicated region
  $region2: #{_ae_forward_impl.1} parent=0 // pred_check
    _
  $region3: #{_ae_forward_impl.1} parent=0 // pred_check_branch
    %15 = sbr.rel (0) target = $region5
  $region4: #{_ae_forward_impl.1} parent=0 // pred_region
    _
  $region5: #{_ae_forward_impl.1} parent=0 // pred_fallthru
    _
  // Predicated region
  $region6: #{_ae_forward_impl.1} parent=0 // pred_check
    _
  $region7: #{_ae_forward_impl.1} parent=0 // pred_check_branch
    %17 = sbr.rel (0) target = $region9
  $region8: #{_ae_forward_impl.1} parent=0 // pred_region
    _
  $region9: #{_ae_forward_impl.1} parent=0 // pred_fallthru
    _
  // Predicated region
  $region10: #{_ae_forward_impl.1} parent=0 // pred_check
    _
  $region11: #{_ae_forward_impl.1} parent=0 // pred_check_branch
    %19 = sbr.rel (0) target = $region13
  $region12: #{_ae_forward_impl.1} parent=0 // pred_region
    _
  $region13: #{_ae_forward_impl.1} parent=0 // pred_fallthru
    _
  // Predicated region
  $region14: #{_ae_forward_impl.1} parent=0 // pred_check
    _
  $region15: #{_ae_forward_impl.1} parent=0 // pred_check_branch
    %21 = sbr.rel (0) target = $region17
  $region16: #{_ae_forward_impl.1} parent=0 // pred_region
    _
  $region17: #{_ae_forward_impl.1} parent=0 // pred_fallthru
    _
  // Predicated region
  $region18: #{_ae_forward_impl.1} parent=0 // pred_check
    _
  $region19: #{_ae_forward_impl.1} parent=0 // pred_check_branch
    %23 = sbr.rel (0) target = $region21
  $region20: #{_ae_forward_impl.1} parent=0 // pred_region
    _
  $region21: #{_ae_forward_impl.1} parent=0 // pred_fallthru
    _
  // Predicated region
  $region22: #{_ae_forward_impl.1} parent=0 // pred_check
    _
  $region23: #{_ae_forward_impl.1} parent=0 // pred_check_branch
    %25 = sbr.rel (0) target = $region25
  $region24: #{_ae_forward_impl.1} parent=0 // pred_region
    _
  $region25: #{_ae_forward_impl.1} parent=0 // pred_fallthru
    _
  // Predicated region
  $region26: #{_ae_forward_impl.1} parent=0 // pred_check
    _
  $region27: #{_ae_forward_impl.1} parent=0 // pred_check_branch
    %27 = sbr.rel (0) target = $region29
  $region28: #{_ae_forward_impl.1} parent=0 // pred_region
    _
  $region29: #{_ae_forward_impl.1} parent=0 // pred_fallthru
    _
  %v28 = vld [vmem:[%s0] sm:$0xff]
  %v29 = vld [vmem:[%s0 + $0x8] sm:$0xff]
  %v30 = vld [vmem:[%s1] sm:$0xff]
  %v31 = vld [vmem:[%s2] sm:$0xff]
  %33 = vset.pattern.permute.xlu0 0
  %34 = vperm.xlu0 %33, %v31
  %v35 = vpop.permute.xlu0 %34
  %vm37 = vcmask 130048
  %v39 = vsel %vm37, %v30, 0
  %41 = vmatprep.subr.mxu0 0.0
  %42 = vmatpush1.msra.mxu0 %v28
  %43 = vmatprep.subr.mxu0 0.0
  %44 = vmatpush1.msra.mxu0 %v29
  %45 = vmatprep.subr.mxu0 0.0
  %46 = vmatpush1.msra.mxu0 0.0
  %47 = vmatprep.subr.mxu0 0.0
  %48 = vmatpush1.msra.mxu0 0.0
  %49 = vmatprep.subr.mxu0 0.0
  %50 = vmatpush1.msra.mxu0 0.0
  %51 = vmatprep.subr.mxu0 0.0
  %52 = vmatpush1.msra.mxu0 0.0
  %53 = vmatprep.subr.mxu0 0.0
  %54 = vmatpush1.msra.mxu0 0.0
  %55 = vmatprep.subr.mxu0 0.0
  %56 = vmatpush1.msra.mxu0 0.0
  %57 = vmatprep.subr.mxu0 0.0
  %58 = vmatpush1.msra.mxu0 0.0
  %59 = vmatprep.subr.mxu0 0.0
  %60 = vmatpush1.msra.mxu0 0.0
  %61 = vmatprep.subr.mxu0 0.0
  %62 = vmatpush1.msra.mxu0 0.0
  %63 = vmatprep.subr.mxu0 0.0
  %64 = vmatpush1.msra.mxu0 0.0
  %65 = vmatprep.subr.mxu0 0.0
  %66 = vmatpush1.msra.mxu0 0.0
  %67 = vmatprep.subr.mxu0 0.0
  %68 = vmatpush1.msra.mxu0 0.0
  %69 = vmatprep.subr.mxu0 0.0
  %70 = vmatpush1.msra.mxu0 0.0
  %71 = vmatprep.subr.mxu0 0.0
  %72 = vmatpush1.msra.mxu0 0.0
  %73 = vmatprep.subr.mxu0 0.0
  %74 = vmatpush1.msra.mxu0 0.0
  %75 = vmatprep.subr.mxu0 0.0
  %76 = vmatpush1.msra.mxu0 0.0
  %77 = vmatprep.subr.mxu0 0.0
  %78 = vmatpush1.msra.mxu0 0.0
  %79 = vmatprep.subr.mxu0 0.0
  %80 = vmatpush1.msra.mxu0 0.0
  %81 = vmatprep.subr.mxu0 0.0
  %82 = vmatpush1.msra.mxu0 0.0
  %83 = vmatprep.subr.mxu0 0.0
  %84 = vmatpush1.msra.mxu0 0.0
  %85 = vmatprep.subr.mxu0 0.0
  %86 = vmatpush1.msra.mxu0 0.0
  %87 = vmatprep.subr.mxu0 0.0
  %88 = vmatpush1.msra.mxu0 0.0
  %89 = vmatprep.subr.mxu0 0.0
  %90 = vmatpush1.msra.mxu0 0.0
  %91 = vmatprep.subr.mxu0 0.0
  %92 = vmatpush1.msra.mxu0 0.0
  %93 = vmatprep.subr.mxu0 0.0
  %94 = vmatpush1.msra.mxu0 0.0
  %95 = vmatprep.subr.mxu0 0.0
  %96 = vmatpush1.msra.mxu0 0.0
  %97 = vmatprep.subr.mxu0 0.0
  %98 = vmatpush1.msra.mxu0 0.0
  %99 = vmatprep.subr.mxu0 0.0
  %100 = vmatpush1.msra.mxu0 0.0
  %101 = vmatprep.subr.mxu0 0.0
  %102 = vmatpush1.msra.mxu0 0.0
  %103 = vmatprep.subr.mxu0 0.0
  %104 = vmatpush1.msra.mxu0 0.0
  %105 = vmatprep.mubr.f32.mxu0 0.0
  %106 = vmatmul.mubr.f32.gmra.mrb[0].mxu0 %v39
  %v107 = vpop.f32.mrb[0].mxu0
  %v108 = vadd.f32 %v35, %v107
  %v109 = vpop.f32.mrb[0].mxu0
  %110 = vdwg.mxu0
  %v111 = vmax.f32 %v108, 0.0
  %v112 = vld [vmem:[%s3] sm:$0xff]
  %v113 = vld [vmem:[%s4] sm:$0xff]
  %115 = vset.pattern.permute.xlu0 0
  %116 = vperm.xlu0 %115, %v113
  %v117 = vpop.permute.xlu0 %116
  %vm119 = vcmask 64512
  %v121 = vsel %vm119, %v112, 0
  %123 = vmatprep.subr.mxu0 0.0
  %124 = vmatpush1.msra.mxu0 %v111
  %125 = vmatprep.subr.mxu0 0.0
  %126 = vmatpush1.msra.mxu0 0.0
  %127 = vmatprep.subr.mxu0 0.0
  %128 = vmatpush1.msra.mxu0 0.0
  %129 = vmatprep.subr.mxu0 0.0
  %130 = vmatpush1.msra.mxu0 0.0
  %131 = vmatprep.subr.mxu0 0.0
  %132 = vmatpush1.msra.mxu0 0.0
  %133 = vmatprep.subr.mxu0 0.0
  %134 = vmatpush1.msra.mxu0 0.0
  %135 = vmatprep.subr.mxu0 0.0
  %136 = vmatpush1.msra.mxu0 0.0
  %137 = vmatprep.subr.mxu0 0.0
  %138 = vmatpush1.msra.mxu0 0.0
  %139 = vmatprep.subr.mxu0 0.0
  %140 = vmatpush1.msra.mxu0 0.0
  %141 = vmatprep.subr.mxu0 0.0
  %142 = vmatpush1.msra.mxu0 0.0
  %143 = vmatprep.subr.mxu0 0.0
  %144 = vmatpush1.msra.mxu0 0.0
  %145 = vmatprep.subr.mxu0 0.0
  %146 = vmatpush1.msra.mxu0 0.0
  %147 = vmatprep.subr.mxu0 0.0
  %148 = vmatpush1.msra.mxu0 0.0
  %149 = vmatprep.subr.mxu0 0.0
  %150 = vmatpush1.msra.mxu0 0.0
  %151 = vmatprep.subr.mxu0 0.0
  %152 = vmatpush1.msra.mxu0 0.0
  %153 = vmatprep.subr.mxu0 0.0
  %154 = vmatpush1.msra.mxu0 0.0
  %155 = vmatprep.subr.mxu0 0.0
  %156 = vmatpush1.msra.mxu0 0.0
  %157 = vmatprep.subr.mxu0 0.0
  %158 = vmatpush1.msra.mxu0 0.0
  %159 = vmatprep.subr.mxu0 0.0
  %160 = vmatpush1.msra.mxu0 0.0
  %161 = vmatprep.subr.mxu0 0.0
  %162 = vmatpush1.msra.mxu0 0.0
  %163 = vmatprep.subr.mxu0 0.0
  %164 = vmatpush1.msra.mxu0 0.0
  %165 = vmatprep.subr.mxu0 0.0
  %166 = vmatpush1.msra.mxu0 0.0
  %167 = vmatprep.subr.mxu0 0.0
  %168 = vmatpush1.msra.mxu0 0.0
  %169 = vmatprep.subr.mxu0 0.0
  %170 = vmatpush1.msra.mxu0 0.0
  %171 = vmatprep.subr.mxu0 0.0
  %172 = vmatpush1.msra.mxu0 0.0
  %173 = vmatprep.subr.mxu0 0.0
  %174 = vmatpush1.msra.mxu0 0.0
  %175 = vmatprep.subr.mxu0 0.0
  %176 = vmatpush1.msra.mxu0 0.0
  %177 = vmatprep.subr.mxu0 0.0
  %178 = vmatpush1.msra.mxu0 0.0
  %179 = vmatprep.subr.mxu0 0.0
  %180 = vmatpush1.msra.mxu0 0.0
  %181 = vmatprep.subr.mxu0 0.0
  %182 = vmatpush1.msra.mxu0 0.0
  %183 = vmatprep.subr.mxu0 0.0
  %184 = vmatpush1.msra.mxu0 0.0
  %185 = vmatprep.subr.mxu0 0.0
  %186 = vmatpush1.msra.mxu0 0.0
  %187 = vmatprep.mubr.f32.mxu0 0.0
  %188 = vmatmul.mubr.f32.gmra.mrb[0].mxu0 %v121
  %v189 = vpop.f32.mrb[0].mxu0
  %v190 = vadd.f32 %v117, %v189
  %v191 = vpop.f32.mrb[0].mxu0
  %192 = vdwg.mxu0
  %v193 = vmax.f32 %v190, 0.0
  %v194 = vld [vmem:[%s5] sm:$0xff]
  %v195 = vld [vmem:[%s5 + $0x8] sm:$0xff]
  %v196 = vld [vmem:[%s6] sm:$0xff]
  %v197 = vld [vmem:[%s6 + $0x8] sm:$0xff]
  %199 = vset.pattern.permute.xlu0 0
  %200 = vperm.xlu0 %199, %v196
  %v201 = vpop.permute.xlu0 %200
  %204 = vset.pattern.permute.xlu0 0
  %205 = vperm.xlu0 %204, %v197
  %v206 = vpop.permute.xlu0 %205
  %v209 = vsel %vm119, %v194, 0
  %v212 = vsel %vm119, %v195, 0
  %214 = vmatprep.subr.mxu0 0.0
  %215 = vmatpush1.msra.mxu0 %v193
  %216 = vmatprep.subr.mxu0 0.0
  %217 = vmatpush1.msra.mxu0 0.0
  %218 = vmatprep.subr.mxu0 0.0
  %219 = vmatpush1.msra.mxu0 0.0
  %220 = vmatprep.subr.mxu0 0.0
  %221 = vmatpush1.msra.mxu0 0.0
  %222 = vmatprep.subr.mxu0 0.0
  %223 = vmatpush1.msra.mxu0 0.0
  %224 = vmatprep.subr.mxu0 0.0
  %225 = vmatpush1.msra.mxu0 0.0
  %226 = vmatprep.subr.mxu0 0.0
  %227 = vmatpush1.msra.mxu0 0.0
  %228 = vmatprep.subr.mxu0 0.0
  %229 = vmatpush1.msra.mxu0 0.0
  %230 = vmatprep.subr.mxu0 0.0
  %231 = vmatpush1.msra.mxu0 0.0
  %232 = vmatprep.subr.mxu0 0.0
  %233 = vmatpush1.msra.mxu0 0.0
  %234 = vmatprep.subr.mxu0 0.0
  %235 = vmatpush1.msra.mxu0 0.0
  %236 = vmatprep.subr.mxu0 0.0
  %237 = vmatpush1.msra.mxu0 0.0
  %238 = vmatprep.subr.mxu0 0.0
  %239 = vmatpush1.msra.mxu0 0.0
  %240 = vmatprep.subr.mxu0 0.0
  %241 = vmatpush1.msra.mxu0 0.0
  %242 = vmatprep.subr.mxu0 0.0
  %243 = vmatpush1.msra.mxu0 0.0
  %244 = vmatprep.subr.mxu0 0.0
  %245 = vmatpush1.msra.mxu0 0.0
  %246 = vmatprep.subr.mxu0 0.0
  %247 = vmatpush1.msra.mxu0 0.0
  %248 = vmatprep.subr.mxu0 0.0
  %249 = vmatpush1.msra.mxu0 0.0
  %250 = vmatprep.subr.mxu0 0.0
  %251 = vmatpush1.msra.mxu0 0.0
  %252 = vmatprep.subr.mxu0 0.0
  %253 = vmatpush1.msra.mxu0 0.0
  %254 = vmatprep.subr.mxu0 0.0
  %255 = vmatpush1.msra.mxu0 0.0
  %256 = vmatprep.subr.mxu0 0.0
  %257 = vmatpush1.msra.mxu0 0.0
  %258 = vmatprep.subr.mxu0 0.0
  %259 = vmatpush1.msra.mxu0 0.0
  %260 = vmatprep.subr.mxu0 0.0
  %261 = vmatpush1.msra.mxu0 0.0
  %262 = vmatprep.subr.mxu0 0.0
  %263 = vmatpush1.msra.mxu0 0.0
  %264 = vmatprep.subr.mxu0 0.0
  %265 = vmatpush1.msra.mxu0 0.0
  %266 = vmatprep.subr.mxu0 0.0
  %267 = vmatpush1.msra.mxu0 0.0
  %268 = vmatprep.subr.mxu0 0.0
  %269 = vmatpush1.msra.mxu0 0.0
  %270 = vmatprep.subr.mxu0 0.0
  %271 = vmatpush1.msra.mxu0 0.0
  %272 = vmatprep.subr.mxu0 0.0
  %273 = vmatpush1.msra.mxu0 0.0
  %274 = vmatprep.subr.mxu0 0.0
  %275 = vmatpush1.msra.mxu0 0.0
  %276 = vmatprep.subr.mxu0 0.0
  %277 = vmatpush1.msra.mxu0 0.0
  %278 = vmatprep.mubr.f32.mxu0 0.0
  %279 = vmatmul.mubr.f32.gmra.mrb[0].mxu0 %v209
  %v280 = vpop.f32.mrb[0].mxu0
  %v281 = vadd.f32 %v201, %v280
  %v282 = vpop.f32.mrb[0].mxu0
  %283 = vmatprep.mubr.f32.mxu0 0.0
  %284 = vmatmul.mubr.f32.gmra.mrb[0].mxu0 %v212
  %v285 = vpop.f32.mrb[0].mxu0
  %v286 = vadd.f32 %v206, %v285
  %v287 = vpop.f32.mrb[0].mxu0
  %288 = vdwg.mxu0
  %289 = vst [vmem:[%s7] sm:$0xff] %v281
  %290 = vst [vmem:[%s7 + $0x8] sm:$0xff] %v286
  %v291 = vsub.f32 %v28, %v281
  %v292 = vsub.f32 %v29, %v286
  %v293 = vmul.f32 %v291, %v291
  %v294 = vmul.f32 %v292, %v292
  %v295 = vadd.f32 %v293, %v294
  %v296 = vrot.slane %v295, 4
  %v297 = vadd.f32 %v295, %v296
  %v298 = vrot.slane %v297, 2
  %v299 = vadd.f32 %v297, %v298
  %v300 = vrot.slane %v299, 1
  %v301 = vadd.f32 %v299, %v300
  %v302 = vrcp.pop 16.0
  %v303 = vmul.f32 %v301, %v302
  %304 = vst [vmem:[%s8] sm:$0x1] %v303
  // Predicated region
  $region30: #{_ae_forward_impl.1} parent=0 // pred_check
    _
  $region31: #{_ae_forward_impl.1} parent=0 // pred_check_branch
    %306 = sbr.rel (0) target = $region33
  $region32: #{_ae_forward_impl.1} parent=0 // pred_region
    _
  $region33: #{_ae_forward_impl.1} parent=0 // pred_fallthru
    _
  // Predicated region
  $region34: #{_ae_forward_impl.1} parent=0 // pred_check
    _
  $region35: #{_ae_forward_impl.1} parent=0 // pred_check_branch
    %308 = sbr.rel (0) target = $region37
  $region36: #{_ae_forward_impl.1} parent=0 // pred_region
    _
  $region37: #{_ae_forward_impl.1} parent=0 // pred_fallthru
    _
  // Predicated region
  $region38: #{_ae_forward_impl.1} parent=0 // pred_check
    _
  $region39: #{_ae_forward_impl.1} parent=0 // pred_check_branch
    %310 = sbr.rel (0) target = $region41
  $region40: #{_ae_forward_impl.1} parent=0 // pred_region
    _
  $region41: #{_ae_forward_impl.1} parent=0 // pred_fallthru
    _
  // Predicated region
  $region42: #{_ae_forward_impl.1} parent=0 // pred_check
    _
  $region43: #{_ae_forward_impl.1} parent=0 // pred_check_branch
    %312 = sbr.rel (0) target = $region45
  $region44: #{_ae_forward_impl.1} parent=0 // pred_region
    _
  $region45: #{_ae_forward_impl.1} parent=0 // pred_fallthru
    _

</llo_original>
